<compile_context>
chip_gen: v6e
topology: v6e:2x2x1
jax: 0.10.0
libtpu: 0.0.40
codegen_flags: <defaults>
</compile_context>

<pallas_src>
import jax
import jax.numpy as jnp
from jax.experimental import pallas as pl
from jax.experimental.pallas import tpu as pltpu


def _make_kernel(tc, W, c_steps):
    def aggmax_kernel(x_ref, o_ref):
        # x_ref: (N, tc, th, W) input tile.
        # o_ref: (th, C*W) lane-dense output block, resident across the C axis.
        m = jnp.max(x_ref[...], axis=0)                     # (tc, th, W), VPU only
        if c_steps == 1:
            base = 0                                        # static lane offsets
        else:
            base = pl.multiple_of(pl.program_id(1) * (tc * W), tc * W)
        for ci in range(tc):                                # channel ci -> lanes [*, *+W)
            o_ref[:, pl.ds(base + ci * W, W)] = m[ci]
    return aggmax_kernel


def _choose_tiles(N, C, H, W, itemsize, budget=4 << 20, max_tc=256):
    """Pick (th, tc): an H tile (multiple of 8 dividing H, or full H) and a
    divisor of C, sized so double-buffered input blocks stay well under the
    scoped-VMEM limit on every generation (v5e/v6e/v7x).  tc is also capped
    to bound the unrolled per-channel store count."""
    divs = sorted(d for d in range(1, C + 1) if C % d == 0)
    tc = max(d for d in divs if d <= max_tc)

    h_opts = sorted({t for t in range(8, H + 1, 8) if H % t == 0} | {H})
    multi = [t for t in h_opts if H // t >= 2]              # >=2 steps on the
    cand = multi if multi else h_opts                       # parallel axis (v7x)

    def blk_bytes(d, t):
        return N * d * t * W * itemsize

    th = min(cand)
    for t in sorted(cand, reverse=True):                    # biggest tile that fits
        if blk_bytes(tc, t) <= budget:
            th = t
            break
    if blk_bytes(tc, th) > budget:                          # shrink channel tile
        for d in sorted(divs, reverse=True):
            if d <= max_tc and blk_bytes(d, th) <= budget:
                tc = d
                break
        else:
            tc = 1
    return th, tc


def agg_max(x):
    N, C, H, W = x.shape
    th, tc = _choose_tiles(N, C, H, W, x.dtype.itemsize)
    c_steps = C // tc
    grid = (H // th, c_steps)

    cost = pl.CostEstimate(
        flops=max(N - 1, 0) * C * H * W,                    # chained vmax compares
        transcendentals=0,
        bytes_accessed=(N + 1) * C * H * W * x.dtype.itemsize,
    )

    out2d = pl.pallas_call(
        _make_kernel(tc, W, c_steps),
        out_shape=jax.ShapeDtypeStruct((H, C * W), x.dtype),
        grid=grid,
        in_specs=[pl.BlockSpec((N, tc, th, W), lambda h, c: (0, c, h, 0))],
        out_specs=pl.BlockSpec((th, C * W), lambda h, c: (h, 0)),
        compiler_params=pltpu.CompilerParams(
            dimension_semantics=("parallel", "arbitrary"),
            vmem_limit_bytes=32 * 1024 * 1024,
        ),
        cost_estimate=cost,
    )(x)
    # (H, C*W) and (1, H, C, W) share the same memory layout: free reshape.
    return out2d.reshape(1, H, C, W)


if __name__ == "__main__":
    key = jax.random.PRNGKey(0)
    # Small NCHW input consistent with the module's forward.
    x = jax.random.normal(key, (2, 4, 16, 16), dtype=jnp.float32)

    out = jax.block_until_ready(agg_max(x))

    # Reference in plain JAX (mirrors torch: max over dim 0 keepdim, transpose(2, 1)).
    ref = jnp.swapaxes(jnp.max(x, axis=0, keepdims=True), 1, 2)
    assert out.shape == ref.shape == (1, 16, 4, 16)
    assert jnp.allclose(out, ref), "mismatch vs reference"
    print("KERNEL_OK")
</pallas_src>

<mosaic_0001>
module attributes {stable_mosaic.version = 11 : i64} {
  func.func @aggmax_kernel(%arg0: i32, %arg1: i32, %arg2: memref<2x4x8x16xf32, #tpu.memory_space<vmem>>, %arg3: memref<8x64xf32, #tpu.memory_space<vmem>>) attributes {dimension_semantics = [#tpu.dimension_semantics<parallel>, #tpu.dimension_semantics<arbitrary>], iteration_bounds = array<i64: 2, 1>, scalar_prefetch = 0 : i64, scratch_operands = 0 : i64, tpu.core_type = #tpu.core_type<tc>, window_params = [{transform_indices = @transform_0, window_bounds = array<i64: 2, 4, 8, 16>}, {transform_indices = @transform_1, window_bounds = array<i64: 8, 64>}]} {
    %c0 = arith.constant 0 : index
    %c0_0 = arith.constant 0 : index
    %c0_1 = arith.constant 0 : index
    %c0_2 = arith.constant 0 : index
    %0 = vector.load %arg2[%c0, %c0_0, %c0_1, %c0_2] : memref<2x4x8x16xf32, #tpu.memory_space<vmem>>, vector<2x4x8x16xf32>
    %cst = arith.constant dense<0xFF800000> : vector<4x8x16xf32>
    %1 = vector.multi_reduction <maximumf>, %0, %cst [0] : vector<2x4x8x16xf32> to vector<4x8x16xf32>
    %2 = vector.extract_strided_slice %1 {offsets = [0, 0, 0], sizes = [1, 8, 16], strides = [1, 1, 1]} : vector<4x8x16xf32> to vector<1x8x16xf32>
    %3 = vector.shape_cast %2 : vector<1x8x16xf32> to vector<8x16xf32>
    %c0_3 = arith.constant 0 : index
    %c0_4 = arith.constant 0 : index
    %4 = vector.load %arg3[%c0_3, %c0_4] : memref<8x64xf32, #tpu.memory_space<vmem>>, vector<8x16xf32>
    tpu.vector_store %arg3[%c0_3, %c0_4], %3 {strides = array<i32>} : memref<8x64xf32, #tpu.memory_space<vmem>>, vector<8x16xf32>,
    %5 = vector.extract_strided_slice %1 {offsets = [1, 0, 0], sizes = [1, 8, 16], strides = [1, 1, 1]} : vector<4x8x16xf32> to vector<1x8x16xf32>
    %6 = vector.shape_cast %5 : vector<1x8x16xf32> to vector<8x16xf32>
    %c0_5 = arith.constant 0 : index
    %c16 = arith.constant 16 : index
    %7 = vector.load %arg3[%c0_5, %c16] : memref<8x64xf32, #tpu.memory_space<vmem>>, vector<8x16xf32>
    tpu.vector_store %arg3[%c0_5, %c16], %6 {strides = array<i32>} : memref<8x64xf32, #tpu.memory_space<vmem>>, vector<8x16xf32>,
    %8 = vector.extract_strided_slice %1 {offsets = [2, 0, 0], sizes = [1, 8, 16], strides = [1, 1, 1]} : vector<4x8x16xf32> to vector<1x8x16xf32>
    %9 = vector.shape_cast %8 : vector<1x8x16xf32> to vector<8x16xf32>
    %c0_6 = arith.constant 0 : index
    %c32 = arith.constant 32 : index
    %10 = vector.load %arg3[%c0_6, %c32] : memref<8x64xf32, #tpu.memory_space<vmem>>, vector<8x16xf32>
    tpu.vector_store %arg3[%c0_6, %c32], %9 {strides = array<i32>} : memref<8x64xf32, #tpu.memory_space<vmem>>, vector<8x16xf32>,
    %11 = vector.extract_strided_slice %1 {offsets = [3, 0, 0], sizes = [1, 8, 16], strides = [1, 1, 1]} : vector<4x8x16xf32> to vector<1x8x16xf32>
    %12 = vector.shape_cast %11 : vector<1x8x16xf32> to vector<8x16xf32>
    %c0_7 = arith.constant 0 : index
    %c48 = arith.constant 48 : index
    %13 = vector.load %arg3[%c0_7, %c48] : memref<8x64xf32, #tpu.memory_space<vmem>>, vector<8x16xf32>
    tpu.vector_store %arg3[%c0_7, %c48], %12 {strides = array<i32>} : memref<8x64xf32, #tpu.memory_space<vmem>>, vector<8x16xf32>,
    return
  }
  func.func @transform_0(%arg0: i32, %arg1: i32) -> (i32, i32, i32, i32) {
    %c0_i32 = arith.constant 0 : i32
    %c0_i32_0 = arith.constant 0 : i32
    %c0_i32_1 = arith.constant 0 : i32
    return %c0_i32, %arg1, %arg0, %c0_i32_0 : i32, i32, i32, i32
  }
  func.func @transform_1(%arg0: i32, %arg1: i32) -> (i32, i32) {
    %c0_i32 = arith.constant 0 : i32
    %c0_i32_0 = arith.constant 0 : i32
    return %arg0, %c0_i32 : i32, i32
  }
}

</mosaic_0001>

<llo_original>
// kernel: tpu_custom_call.1
$region0: #{tpu_custom_call.1}
  #allocation0 [shape = 'u32[]', space=smem, size = 0x4, offset = 0x4, fixed_abs, tag = 'smem constant byte address 0x4 - core index']
  #allocation1 [shape = 'u32[144,128]{1,0:T(1,128)}', space=vmem, size = 0x12000, scoped, tag = 'internal scratch']
  %s0 = inlined_call_operand.hbm [shape: f32[2,4,16,16], index: 0, kind: input, shape index: {}]
  %s1 = inlined_call_operand.hbm [shape: f32[16,64], index: 1, kind: output, shape index: {}]
  %s2 = sld [smem:[#allocation0]]
  $region41: #{tpu_custom_call.1} parent=0
    _
  %s4 = ssub.s32 1, %s2
  %s5 = scalar_select 0, %s4, %s2
  $region1: #{tpu_custom_call.1} parent=0
    #allocation2 [shape = 'u8[65536]{0}', space=vmem, size = 0x10000, scoped, tag = 'input window, operand 0']
    #allocation3 [shape = 's32[2]{0}', space=sflag, size = 0x8, scoped, tag = 'scoped memory for tpu_custom_call.1']
    #allocation4 [shape = 's32[2]{0}', space=sflag, size = 0x8, scoped, tag = 'scoped memory for tpu_custom_call.1']
    #allocation5 [shape = 'u8[8192]{0}', space=vmem, size = 0x2000, scoped, tag = 'output window, operand 0']
    %6 = vsyncpa [#allocation3], 0
    %s7 = scalar_lea.sflag [#allocation3], 1
    %8 = vsyncpa %s7, 0
    %9 = vsyncpa [#allocation4], 0
    %s10 = scalar_lea.sflag [#allocation4], 1
    %11 = vsyncpa %s10, 0
    loop: start=0, step=1, limit=4
    $region2: #{tpu_custom_call.1} parent=1 // loop_pre_header
      _
    $region3: #{tpu_custom_call.1} parent=1 // loop_header
      %s13 = sphi 0, %s17
      %p14 = scmp.ge.s32.totalorder %s13, 4
      %s20 = sphi 0, %s32
      %s21 = sphi 0, %s28
      %s22 = sphi 0, %s20
      %s23 = sphi 0, %s21
      %s24 = sphi 0, %s22
      %s25 = sphi 0, %s23
      %s37 = sphi 0, %s39
      %s40 = sphi 0, %s37
      %s41 = sphi 0, %s40
      %s57 = sphi 0, %s41
      %s63 = sphi 0, %s65
      %s66 = sphi 0, %s63
      %s67 = sphi 0, %s66
      %s83 = sphi 0, %s67
    $region4: #{tpu_custom_call.1} parent=1 // loop_header_branch
      %16 = sbr.rel (%p14) target = $region8
    $region5: #{tpu_custom_call.1} parent=1 // loop_body
      %s18 = ssub.s32 %s13, 1
      %s19 = ssub.s32 %s13, 2
      %s26 = sadd.s32 1, %s21
      %p27 = scmp.ge.s32.totalorder %s26, 1
      %s28 = scalar_select %p27, 0, %s26
      %s29 = sadd.s32 1, %s20
      %s30 = scalar_select %p27, %s29, %s20
      %p31 = scmp.ge.s32.totalorder %s30, 2
      %s32 = scalar_select %p31, 0, %s30
      %s33 = ssub.s32 %s21, %s28
      %s34 = ssub.s32 %s20, %s32
      %s35 = sor.u32 %s33, %s34
      %p36 = scmp.eq.s32.totalorder %s35, 0
      %s38 = sadd.s32 %s37, 1
      %s39 = scalar_select %p36, %s37, %s38
      %p42 = pneg %p36
      %p43 = scmp.eq.s32.totalorder %s13, 1
      %p44 = por %p42, %p43
      %p45 = scmp.ne.s32.totalorder %s37, %s40
      %p46 = scmp.eq.s32.totalorder %s13, 0
      %p47 = por %p45, %p46
      %p48 = scmp.ne.s32.totalorder %s37, %s40
      %p49 = scmp.eq.s32.totalorder %s18, 1
      %p50 = por %p48, %p49
      %p51 = scmp.ne.s32.totalorder %s40, %s41
      %p52 = scmp.eq.s32.totalorder %s18, 0
      %p53 = por %p51, %p52
      %p54 = scmp.ne.s32.totalorder %s40, %s41
      %p55 = scmp.eq.s32.totalorder %s19, 1
      %p56 = por %p54, %p55
      %p58 = scmp.ne.s32.totalorder %s41, %s57
      %p59 = scmp.eq.s32.totalorder %s19, 0
      %p60 = por %p58, %p59
      %s61 = ssub.s32 %s20, %s32
      %p62 = scmp.eq.s32.totalorder %s61, 0
      %s64 = sadd.s32 %s63, 1
      %s65 = scalar_select %p62, %s63, %s64
      %p68 = pneg %p62
      %p69 = scmp.eq.s32.totalorder %s13, 1
      %p70 = por %p68, %p69
      %p71 = scmp.ne.s32.totalorder %s63, %s66
      %p72 = scmp.eq.s32.totalorder %s13, 0
      %p73 = por %p71, %p72
      %p74 = scmp.ne.s32.totalorder %s63, %s66
      %p75 = scmp.eq.s32.totalorder %s18, 1
      %p76 = por %p74, %p75
      %p77 = scmp.ne.s32.totalorder %s66, %s67
      %p78 = scmp.eq.s32.totalorder %s18, 0
      %p79 = por %p77, %p78
      %p80 = scmp.ne.s32.totalorder %s66, %s67
      %p81 = scmp.eq.s32.totalorder %s19, 1
      %p82 = por %p80, %p81
      %p84 = scmp.ne.s32.totalorder %s67, %s83
      %p85 = scmp.eq.s32.totalorder %s19, 0
      %p86 = por %p84, %p85
      %p87 = scmp.le.s32.totalorder 1, %s13
      %p88 = scmp.lt.s32.totalorder %s13, 3
      %p89 = pnand %p87, %p88
      %p90 = pneg %p89
      // Predicated region
      $region9: #{tpu_custom_call.1} parent=5 // pred_check
        _
      $region10: #{tpu_custom_call.1} parent=5 // pred_check_branch
        %92 = sbr.rel (%p89) target = $region12
      $region11: #{tpu_custom_call.1} parent=5 // pred_region
        %s93 = ssub.s32 %s13, 1
      $region12: #{tpu_custom_call.1} parent=5 // pred_fallthru
        _
      %p94 = scmp.lt.s32.totalorder %s13, 2
      // Predicated region
      $region13: #{tpu_custom_call.1} parent=5 // pred_check
        %p95 = pneg %p94
      $region14: #{tpu_custom_call.1} parent=5 // pred_check_branch
        %97 = sbr.rel (%p95) target = $region16
      $region15: #{tpu_custom_call.1} parent=5 // pred_region
        // Predicated region
        $region17: #{tpu_custom_call.1} parent=15 // pred_check
          %p98 = pneg %p47
        $region18: #{tpu_custom_call.1} parent=15 // pred_check_branch
          %100 = sbr.rel (%p98) target = $region20
        $region19: #{tpu_custom_call.1} parent=15 // pred_region
          %s101 = sand.u32 %s37, 1
          %s102 = scalar_lea.sflag [#allocation3], %s101
          %s103 = sand.u32 %s37, 1
          %s104 = smul.addr %s103, 64
          %s105 = scalar_lea.vmem [#allocation2], %s104
          %s106 = smul.u32 4, %s21
          %s108 = ssub.s32 1024, 1024
          %109 = vsyncadd %s102, %s108
          %s110 = smul.addr %s106, 2
          %s111 = sadd.s32 %s20, %s110
          %s112 = smul.addr %s111, 128
          %s113 = scalar_lea.hbm %s0, %s112
          %s114 = sshll.u32 %s105, 4
          %s115 = int_to_ptr.vmem [resolvable:$true] %s114
          %120 = dma.hbm_to_vmem [thread:$0]  %s113, 1024, %s115, %s102, 256, 128, 8
        $region20: #{tpu_custom_call.1} parent=15 // pred_fallthru
          _
      $region16: #{tpu_custom_call.1} parent=5 // pred_fallthru
        _
      %p121 = scmp.le.s32.totalorder 1, %s13
      %p122 = scmp.lt.s32.totalorder %s13, 3
      %p123 = pnand %p121, %p122
      %p124 = pneg %p123
      // Predicated region
      $region21: #{tpu_custom_call.1} parent=5 // pred_check
        _
      $region22: #{tpu_custom_call.1} parent=5 // pred_check_branch
        %126 = sbr.rel (%p123) target = $region24
      $region23: #{tpu_custom_call.1} parent=5 // pred_region
        %s127 = ssub.s32 %s13, 1
        %s128 = sand.u32 %s40, 1
        %s129 = scalar_lea.sflag [#allocation3], %s128
        %s130 = sand.u32 %s40, 1
        %s131 = smul.addr %s130, 64
        %s132 = scalar_lea.vmem [#allocation2], %s131
        // Predicated region
        $region25: #{tpu_custom_call.1} parent=23 // pred_check
          %p133 = pneg %p53
        $region26: #{tpu_custom_call.1} parent=23 // pred_check_branch
          %135 = sbr.rel (%p133) target = $region28
        $region27: #{tpu_custom_call.1} parent=23 // pred_region
          %136 = dma.done %s129, 1024
        $region28: #{tpu_custom_call.1} parent=23 // pred_fallthru
          _
        %s137 = sand.u32 %s40, 1
        %s138 = scalar_lea.sflag [#allocation3], %s137
        %s139 = sand.u32 %s40, 1
        %s140 = smul.addr %s139, 64
        %s141 = scalar_lea.vmem [#allocation2], %s140
        %p142 = pneg %p53
        %p143 = pneg %p50
        %p144 = pneg %p79
        %p145 = pneg %p76
        %s146 = sand.u32 %s66, 1
        %s147 = scalar_lea.sflag [#allocation4], %s146
        %s148 = sand.u32 %s66, 1
        %s149 = smul.addr %s148, 8
        %s150 = scalar_lea.vmem [#allocation5], %s149
        %s151 = smul.u32 4, %s23
        %v152 = vld [vmem:[%s132] sm:$0xff]
        %v153 = vld [vmem:[%s132 + $0x8] sm:$0xff]
        %v154 = vld [vmem:[%s132 + $0x10] sm:$0xff]
        %v155 = vld [vmem:[%s132 + $0x18] sm:$0xff]
        %v156 = vld [vmem:[%s132 + $0x20] sm:$0xff]
        %v157 = vld [vmem:[%s132 + $0x28] sm:$0xff]
        %v158 = vld [vmem:[%s132 + $0x30] sm:$0xff]
        %v159 = vld [vmem:[%s132 + $0x38] sm:$0xff]
        %vm160 = vcmask 130048
        %v161 = vsel %vm160, %v152, -inf
        %v162 = vsel %vm160, %v156, -inf
        %v163 = vmax.f32 %v161, %v162
        %v164 = vsel %vm160, %v153, -inf
        %v165 = vsel %vm160, %v157, -inf
        %v166 = vmax.f32 %v164, %v165
        %v167 = vsel %vm160, %v154, -inf
        %v168 = vsel %vm160, %v158, -inf
        %v169 = vmax.f32 %v167, %v168
        %v170 = vsel %vm160, %v155, -inf
        %v171 = vsel %vm160, %v159, -inf
        %v172 = vmax.f32 %v170, %v171
        %173 = vst.msk [vmem:[%s150] sm:$0xff] %vm160, %v163
        %175 = vrot.lane.b32.xlu0 %v166, 16
        %v176 = vpop.permute.xlu0 %175
        %vm178 = vcmask 261248
        %179 = vst.msk [vmem:[%s150] sm:$0xff] %vm178, %v176
        %181 = vrot.lane.b32.xlu0 %v169, 32
        %v182 = vpop.permute.xlu0 %181
        %vm184 = vcmask 392448
        %185 = vst.msk [vmem:[%s150] sm:$0xff] %vm184, %v182
        %187 = vrot.lane.b32.xlu0 %v172, 48
        %v188 = vpop.permute.xlu0 %187
        %vm190 = vcmask 523648
        %191 = vst.msk [vmem:[%s150] sm:$0xff] %vm190, %v188
        %s192 = sand.u32 %s66, 1
        %s193 = scalar_lea.sflag [#allocation4], %s192
        %s194 = sand.u32 %s66, 1
        %s195 = smul.addr %s194, 8
        %s196 = scalar_lea.vmem [#allocation5], %s195
        // Predicated region
        $region29: #{tpu_custom_call.1} parent=23 // pred_check
          %p197 = pneg %p76
        $region30: #{tpu_custom_call.1} parent=23 // pred_check_branch
          %199 = sbr.rel (%p197) target = $region32
        $region31: #{tpu_custom_call.1} parent=23 // pred_region
          %s201 = ssub.s32 128, 128
          %202 = vsyncadd %s193, %s201
          %s203 = smul.addr %s22, 128
          %s204 = scalar_lea.hbm %s1, %s203
          %s206 = sshll.u32 %s196, 4
          %s207 = int_to_ptr.vmem [resolvable:$true] %s206
          %209 = dma.vmem_to_hbm [thread:$0]  %s207, 128, %s204, %s193
        $region32: #{tpu_custom_call.1} parent=23 // pred_fallthru
          _
      $region24: #{tpu_custom_call.1} parent=5 // pred_fallthru
        _
      %p210 = scmp.le.s32.totalorder 2, %s13
      // Predicated region
      $region33: #{tpu_custom_call.1} parent=5 // pred_check
        %p211 = pneg %p210
      $region34: #{tpu_custom_call.1} parent=5 // pred_check_branch
        %213 = sbr.rel (%p211) target = $region36
      $region35: #{tpu_custom_call.1} parent=5 // pred_region
        %s214 = ssub.s32 %s13, 2
        // Predicated region
        $region37: #{tpu_custom_call.1} parent=35 // pred_check
          %p215 = pneg %p82
        $region38: #{tpu_custom_call.1} parent=35 // pred_check_branch
          %217 = sbr.rel (%p215) target = $region40
        $region39: #{tpu_custom_call.1} parent=35 // pred_region
          %s218 = sand.u32 %s67, 1
          %s219 = scalar_lea.sflag [#allocation4], %s218
          %s220 = sand.u32 %s67, 1
          %s221 = smul.addr %s220, 8
          %s222 = scalar_lea.vmem [#allocation5], %s221
          %223 = dma.done %s219, 128
        $region40: #{tpu_custom_call.1} parent=35 // pred_fallthru
          _
      $region36: #{tpu_custom_call.1} parent=5 // pred_fallthru
        _
    $region6: #{tpu_custom_call.1} parent=1 // loop_footer
      %s17 = sadd.s32 1, %s13
    $region7: #{tpu_custom_call.1} parent=1 // loop_footer_branch
      %12 = sbr.rel target = $region3
    $region8: #{tpu_custom_call.1} parent=1 // loop_exit
      _
    %224 = vsyncpa [#allocation3], 1
    %s225 = scalar_lea.sflag [#allocation3], 1
    %226 = vsyncpa %s225, 1
    %227 = vsyncpa [#allocation4], 1
    %s228 = scalar_lea.sflag [#allocation4], 1
    %229 = vsyncpa %s228, 1

</llo_original>
